<compile_context>
chip_gen: v6e
topology: v6e:2x2x1
jax: 0.10.0
libtpu: 0.0.40
codegen_flags: <defaults>
</compile_context>

<pallas_src>
import numpy as np
import jax
import jax.numpy as jnp
from jax.experimental import pallas as pl
from jax.experimental.pallas import tpu as pltpu

_LANE = 128
_SUBLANE = 8
_BOX_LANES = 10        # [sub cxcywh (4) | obj cxcywh (4) | img_w, img_h (2)]
_PACK_LANES = 16       # folded per-row-scalars width inside the hoi padding
_PACK_W_FALLBACK = 128 # separate packed output width (lane-dense fallback)
_N_PACK = 10           # obj_score, obj_label, sub xyxy (4), obj xyxy (4)


def _round_up(x, m):
    return (x + m - 1) // m * m


def _choose_row_block(n_rows, cap=1024):
    """Pick (padded_rows, row_block).

    Prefers a row_block that (a) exactly divides the 8-row-rounded row count
    (wrapper row-pad becomes a no-op -> no extra HBM copy), (b) yields an even
    grid length >= 2 (both v7x TensorCores busy; harmless on v5e/v6e), and
    (c) is as large as possible (<= cap) to amortize per-grid-step overhead.
    Falls back to padded 512-row blocks for sizes with poor divisor structure.
    """
    rp8 = _round_up(max(n_rows, 1), _SUBLANE)
    start = min(cap, rp8)
    start -= start % _SUBLANE
    best_key, best_blk = None, None
    for cand in range(start, 0, -_SUBLANE):
        if rp8 % cand:
            continue
        grid_len = rp8 // cand
        key = ((grid_len % 2 == 0), cand)   # prefer even grid, then big block
        if best_key is None or key > best_key:
            best_key, best_blk = key, cand
    if best_blk is None or (rp8 > 2 * cap and best_blk < 128):
        best_blk = 512
        rp8 = _round_up(rp8, best_blk)
    return rp8, best_blk


def _make_kernel(fold_packed, pack_off, pack_w):
    def kernel(ol_ref, vl_ref, box_ref, cm_ref, hoi_ref, *rest):
        # Inputs arrive in their native dtype (bf16 DMA halves HBM traffic);
        # all arithmetic is f32 in-kernel (v5e has no bf16 VPU/EUP).
        ol = ol_ref[...].astype(jnp.float32)     # [R, C]   object logits
        vl = vl_ref[...].astype(jnp.float32)     # [R, Vp]  verb logits (padded)
        box = box_ref[...]                       # [R, 10]  sub | obj | (w, h)
        cm_t = cm_ref[...]                       # [C, Vp]  correct_mat^T (bf16 0/1)

        r, c = ol.shape

        # obj_scores = max(sigmoid(x)) == sigmoid(max(x))  (monotone; sigmoid
        # is evaluated at the max element itself, so exact).  One EUP sigmoid
        # per row; max_logit is reused for the argmax path.
        max_logit = jnp.max(ol, axis=-1, keepdims=True)          # [R, 1]
        obj_scores = jax.nn.sigmoid(max_logit)                   # [R, 1]

        # argmax over classes (first max index, matches torch/jnp argmax).
        iota_c = jax.lax.broadcasted_iota(jnp.int32, (r, c), 1)
        idx = jnp.min(jnp.where(ol == max_logit, iota_c, c),
                      axis=-1, keepdims=True)                    # [R, 1] int32

        # mask[r, v] = correct_mat[v, obj_label[r]] via one-hot matmul on the
        # MXU.  correct_mat entries are 0/1 (+ appended ones column), so the
        # bf16 operands are exact.
        onehot = (iota_c == idx).astype(jnp.bfloat16)            # [R, C]
        mask = jnp.dot(onehot, cm_t,
                       preferred_element_type=jnp.float32)       # [R, Vp]

        # hoi_scores = sigmoid(verb_logits) * obj_scores * mask, lane-dense.
        hoi_ref[...] = jax.nn.sigmoid(vl) * obj_scores * mask

        # cxcywh -> xyxy, scaled by per-row (img_w, img_h).
        whs = box[:, 8:10]

        def scaled_xyxy(bb):
            cxcy = bb[:, 0:2]
            half = 0.5 * bb[:, 2:4]
            return (cxcy - half) * whs, (cxcy + half) * whs

        s_lo, s_hi = scaled_xyxy(box[:, 0:4])
        o_lo, o_hi = scaled_xyxy(box[:, 4:8])

        # Per-row scalars (all kept in f32: labels are exact for C < 2^24,
        # pixel-scaled boxes need f32 precision).
        scalars = jnp.concatenate(
            [obj_scores, idx.astype(jnp.float32), s_lo, s_hi, o_lo, o_hi],
            axis=-1)                                             # [R, 10]
        pad = jnp.zeros((r, pack_w - _N_PACK), jnp.float32)
        packed = jnp.concatenate([scalars, pad], axis=-1)        # [R, pack_w]

        if fold_packed:
            # Overwrite the last pack_w zero-padding lanes of the hoi slab
            # (mask == 0 there) -> no separate output array / extra HBM write.
            hoi_ref[:, pack_off:] = packed
        else:
            rest[0][...] = packed

    return kernel


def postprocess_hoi(obj_logits, verb_logits, sub_boxes, obj_boxes,
                    target_sizes, correct_mat):
    """Dense part of PostProcessHOI.forward.

    Args:
      obj_logits:  [B, Q, C]  (C includes the no-object class; correct_mat
                               already carries the appended ones-column)
      verb_logits: [B, Q, V]
      sub_boxes:   [B, Q, 4]  cxcywh in [0, 1]
      obj_boxes:   [B, Q, 4]
      target_sizes:[B, 2]     (img_h, img_w)
      correct_mat: [V, C]

    Returns: obj_scores [B,Q], obj_labels [B,Q], sub_boxes_xyxy [B,Q,4],
             obj_boxes_xyxy [B,Q,4], hoi_scores [B,Q,V]
    """
    b, q, c = obj_logits.shape
    v = verb_logits.shape[-1]
    n_rows = b * q
    vp = _round_up(v, _LANE)
    f32 = jnp.float32

    rp, row_block = _choose_row_block(n_rows)
    grid = (rp // row_block,)
    pad_rows = rp - n_rows

    # Fold the per-row scalars into the hoi padding lanes whenever there is
    # room (e.g. V=117 -> Vp=128); otherwise fall back to a separate slab.
    fold_packed = (vp - v) >= _PACK_LANES
    pack_w = _PACK_LANES if fold_packed else _PACK_W_FALLBACK
    pack_off = vp - _PACK_LANES if fold_packed else 0

    def _maybe_pad_rows(x2d):
        if pad_rows == 0:
            return x2d                   # no-op: no extra HBM copy
        return jnp.pad(x2d, ((0, pad_rows), (0, 0)))

    # Native-dtype inputs (no wrapper cast pass); single pad for verb logits.
    ol_flat = _maybe_pad_rows(obj_logits.reshape(n_rows, c))
    if pad_rows == 0 and vp == v:
        vl_flat = verb_logits.reshape(n_rows, v)
    else:
        vl_flat = jnp.pad(verb_logits.reshape(n_rows, v),
                          ((0, pad_rows), (0, vp - v)))

    img_h = target_sizes[:, 0].astype(f32)
    img_w = target_sizes[:, 1].astype(f32)
    whs = jnp.broadcast_to(jnp.stack([img_w, img_h], axis=1)[:, None, :],
                           (b, q, 2))
    box_slab = _maybe_pad_rows(jnp.concatenate(
        [sub_boxes.reshape(n_rows, 4).astype(f32),
         obj_boxes.reshape(n_rows, 4).astype(f32),
         whs.reshape(n_rows, 2)], axis=-1))                      # [rp, 10]

    # correct_mat [V, C] -> transposed [C, Vp], zero-padded cols, bf16 (exact).
    cm_t = jnp.pad(jnp.transpose(correct_mat).astype(jnp.bfloat16),
                   ((0, 0), (0, vp - v)))

    kernel = _make_kernel(fold_packed, pack_off, pack_w)

    in_specs = [
        pl.BlockSpec((row_block, c), lambda i: (i, 0)),
        pl.BlockSpec((row_block, vp), lambda i: (i, 0)),
        pl.BlockSpec((row_block, _BOX_LANES), lambda i: (i, 0)),
        pl.BlockSpec((c, vp), lambda i: (0, 0)),
    ]
    hoi_spec = pl.BlockSpec((row_block, vp), lambda i: (i, 0))

    if fold_packed:
        out_shape = jax.ShapeDtypeStruct((rp, vp), f32)
        out_specs = hoi_spec
    else:
        out_shape = (jax.ShapeDtypeStruct((rp, vp), f32),
                     jax.ShapeDtypeStruct((rp, pack_w), f32))
        out_specs = [hoi_spec,
                     pl.BlockSpec((row_block, pack_w), lambda i: (i, 0))]

    result = pl.pallas_call(
        kernel,
        out_shape=out_shape,
        grid_spec=pltpu.PrefetchScalarGridSpec(
            num_scalar_prefetch=0,
            grid=grid,
            in_specs=in_specs,
            out_specs=out_specs,
        ),
        compiler_params=pltpu.CompilerParams(
            dimension_semantics=("parallel",)),
    )(ol_flat, vl_flat, box_slab, cm_t)

    if fold_packed:
        hoi_pad = result
        scalars = hoi_pad[:n_rows, pack_off:pack_off + _N_PACK]
    else:
        hoi_pad, packed = result
        scalars = packed[:n_rows, :_N_PACK]

    # NOTE: production consumers should read the padded [rp, vp] slab directly
    # (these slices each cost an extra XLA copy of the output); they are kept
    # here only to return the module's exact output shapes.
    obj_scores = scalars[:, 0].reshape(b, q)
    obj_labels = scalars[:, 1].astype(jnp.int32).reshape(b, q)   # exact ints
    sub_xyxy = scalars[:, 2:6].reshape(b, q, 4)
    obj_xyxy = scalars[:, 6:10].reshape(b, q, 4)
    hoi_scores = hoi_pad[:n_rows, :v].reshape(b, q, v)
    return obj_scores, obj_labels, sub_xyxy, obj_xyxy, hoi_scores

    # TODO(synk): triplet_nms_filter / per-image dict assembly is dynamic,
    # data-dependent Python (argsort + while-loop NMS over variable-size
    # sets); it has no clean Pallas equivalent and stays on host.


def _reference(obj_logits, verb_logits, sub_boxes, obj_boxes, target_sizes,
               correct_mat):
    obj_scores = jnp.max(jax.nn.sigmoid(obj_logits), axis=-1)
    obj_labels = jnp.argmax(obj_logits, axis=-1)
    verb_scores = jax.nn.sigmoid(verb_logits)

    img_h = target_sizes[:, 0]
    img_w = target_sizes[:, 1]
    scale = jnp.stack([img_w, img_h, img_w, img_h], axis=1)[:, None, :]

    def cxcywh_to_xyxy(x):
        cx, cy, w, h = jnp.split(x, 4, axis=-1)
        return jnp.concatenate(
            [cx - 0.5 * w, cy - 0.5 * h, cx + 0.5 * w, cy + 0.5 * h], axis=-1)

    sub_xyxy = cxcywh_to_xyxy(sub_boxes) * scale
    obj_xyxy = cxcywh_to_xyxy(obj_boxes) * scale

    mask = jnp.transpose(correct_mat)[obj_labels]                # [B, Q, V]
    hoi_scores = verb_scores * obj_scores[..., None] * mask
    return obj_scores, obj_labels, sub_xyxy, obj_xyxy, hoi_scores


if __name__ == "__main__":
    B, Q, V = 2, 8, 32
    NUM_OBJ = 15                     # obj logits dim = NUM_OBJ + 1 (no-object)
    C = NUM_OBJ + 1
    SUBJECT_CATEGORY_ID = 0          # kept for parity with the module __init__

    key = jax.random.PRNGKey(0)
    k1, k2, k3, k4 = jax.random.split(key, 4)
    obj_logits = jax.random.normal(k1, (B, Q, C), dtype=jnp.float32)
    verb_logits = jax.random.normal(k2, (B, Q, V), dtype=jnp.float32)
    sub_boxes = jax.random.uniform(k3, (B, Q, 4), dtype=jnp.float32,
                                   minval=0.1, maxval=0.9)
    obj_boxes = jax.random.uniform(k4, (B, Q, 4), dtype=jnp.float32,
                                   minval=0.1, maxval=0.9)
    target_sizes = jnp.array([[480.0, 640.0], [512.0, 384.0]],
                             dtype=jnp.float32)

    # Deterministic synthetic correct_mat [V, NUM_OBJ] + appended ones column,
    # mirroring the np.concatenate in __init__.
    cm_base = (((np.arange(V)[:, None] + np.arange(NUM_OBJ)[None, :]) % 3) == 0
               ).astype(np.float32)
    correct_mat = jnp.asarray(
        np.concatenate([cm_base, np.ones((V, 1), np.float32)], axis=1))

    out = postprocess_hoi(obj_logits, verb_logits, sub_boxes, obj_boxes,
                          target_sizes, correct_mat)
    out = jax.block_until_ready(out)

    ref = _reference(obj_logits, verb_logits, sub_boxes, obj_boxes,
                     target_sizes, correct_mat)

    names = ["obj_scores", "obj_labels", "sub_boxes", "obj_boxes",
             "hoi_scores"]
    for name, got, want in zip(names, out, ref):
        np.testing.assert_allclose(np.asarray(got, dtype=np.float32),
                                   np.asarray(want, dtype=np.float32),
                                   rtol=1e-5, atol=1e-5, err_msg=name)

    print("KERNEL_OK")
</pallas_src>

<mosaic_0001>
module attributes {stable_mosaic.version = 11 : i64} {
  func.func @kernel(%arg0: i32, %arg1: memref<8x16xf32, #tpu.memory_space<vmem>>, %arg2: memref<8x128xf32, #tpu.memory_space<vmem>>, %arg3: memref<8x10xf32, #tpu.memory_space<vmem>>, %arg4: memref<16x128xbf16, #tpu.memory_space<vmem>>, %arg5: memref<8x128xf32, #tpu.memory_space<vmem>>) attributes {dimension_semantics = [#tpu.dimension_semantics<parallel>], iteration_bounds = array<i64: 2>, scalar_prefetch = 0 : i64, scratch_operands = 0 : i64, tpu.core_type = #tpu.core_type<tc>, window_params = [{transform_indices = @transform_0, window_bounds = array<i64: 8, 16>}, {transform_indices = @transform_1, window_bounds = array<i64: 8, 128>}, {transform_indices = @transform_2, window_bounds = array<i64: 8, 10>}, {pipeline_mode = #tpu.pipeline_mode<synchronous>, transform_indices = @transform_3, window_bounds = array<i64: 16, 128>}, {transform_indices = @transform_4, window_bounds = array<i64: 8, 128>}]} {
    %c0 = arith.constant 0 : index
    %c0_0 = arith.constant 0 : index
    %0 = vector.load %arg1[%c0, %c0_0] : memref<8x16xf32, #tpu.memory_space<vmem>>, vector<8x16xf32>
    %c0_1 = arith.constant 0 : index
    %c0_2 = arith.constant 0 : index
    %1 = vector.load %arg2[%c0_1, %c0_2] : memref<8x128xf32, #tpu.memory_space<vmem>>, vector<8x128xf32>
    %c0_3 = arith.constant 0 : index
    %c0_4 = arith.constant 0 : index
    %2 = vector.load %arg3[%c0_3, %c0_4] : memref<8x10xf32, #tpu.memory_space<vmem>>, vector<8x10xf32>
    %c0_5 = arith.constant 0 : index
    %c0_6 = arith.constant 0 : index
    %3 = vector.load %arg4[%c0_5, %c0_6] : memref<16x128xbf16, #tpu.memory_space<vmem>>, vector<16x128xbf16>
    %cst = arith.constant dense<0xFF800000> : vector<8xf32>
    %4 = vector.multi_reduction <maximumf>, %0, %cst [1] : vector<8x16xf32> to vector<8xf32>
    %5 = vector.shape_cast %4 : vector<8xf32> to vector<8x1xf32>
    %6 = arith.negf %5 : vector<8x1xf32>
    %7 = math.exp %6 : vector<8x1xf32>
    %cst_7 = arith.constant 1.000000e+00 : f32
    %8 = vector.broadcast %cst_7 : f32 to vector<8x1xf32>
    %9 = arith.addf %8, %7 : vector<8x1xf32>
    %10 = arith.divf %8, %9 : vector<8x1xf32>
    %11 = tpu.iota {dimensions = array<i32: 1>} : vector<8x16xi32>
    %12 = vector.broadcast %5 : vector<8x1xf32> to vector<8x16xf32>
    %13 = arith.cmpf oeq, %0, %12 : vector<8x16xf32>
    %c16_i32 = arith.constant 16 : i32
    %14 = vector.broadcast %c16_i32 : i32 to vector<8x16xi32>
    %15 = arith.select %13, %11, %14 : vector<8x16xi1>, vector<8x16xi32>
    %cst_8 = arith.constant dense<2147483647> : vector<8xi32>
    %16 = vector.multi_reduction <minsi>, %15, %cst_8 [1] : vector<8x16xi32> to vector<8xi32>
    %17 = vector.shape_cast %16 : vector<8xi32> to vector<8x1xi32>
    %18 = vector.broadcast %17 : vector<8x1xi32> to vector<8x16xi32>
    %19 = arith.cmpi eq, %11, %18 : vector<8x16xi32>
    %20 = arith.extui %19 : vector<8x16xi1> to vector<8x16xi32>
    %21 = arith.sitofp %20 : vector<8x16xi32> to vector<8x16xf32>
    %22 = arith.truncf %21 : vector<8x16xf32> to vector<8x16xbf16>
    %cst_9 = arith.constant dense<0.000000e+00> : vector<8x128xf32>
    %23 = tpu.matmul %22, %3, %cst_9 {dimension_numbers = #tpu.dot_dimension_numbers<[1], [0], [0], [1], [0, 0, 1, 1], [], []>} : vector<8x16xbf16>, vector<16x128xbf16>, vector<8x128xf32> -> vector<8x128xf32>
    %24 = arith.negf %1 : vector<8x128xf32>
    %25 = math.exp %24 : vector<8x128xf32>
    %cst_10 = arith.constant 1.000000e+00 : f32
    %26 = vector.broadcast %cst_10 : f32 to vector<8x128xf32>
    %27 = arith.addf %26, %25 : vector<8x128xf32>
    %28 = arith.divf %26, %27 : vector<8x128xf32>
    %29 = vector.broadcast %10 : vector<8x1xf32> to vector<8x128xf32>
    %30 = arith.mulf %28, %29 : vector<8x128xf32>
    %31 = arith.mulf %30, %23 : vector<8x128xf32>
    %c0_11 = arith.constant 0 : index
    %c0_12 = arith.constant 0 : index
    %32 = vector.load %arg5[%c0_11, %c0_12] : memref<8x128xf32, #tpu.memory_space<vmem>>, vector<8x128xf32>
    tpu.vector_store %arg5[%c0_11, %c0_12], %31 {strides = array<i32>} : memref<8x128xf32, #tpu.memory_space<vmem>>, vector<8x128xf32>,
    %33 = vector.extract_strided_slice %2 {offsets = [0, 8], sizes = [8, 2], strides = [1, 1]} : vector<8x10xf32> to vector<8x2xf32>
    %34 = vector.extract_strided_slice %2 {offsets = [0, 0], sizes = [8, 4], strides = [1, 1]} : vector<8x10xf32> to vector<8x4xf32>
    %35 = vector.extract_strided_slice %34 {offsets = [0, 0], sizes = [8, 2], strides = [1, 1]} : vector<8x4xf32> to vector<8x2xf32>
    %36 = vector.extract_strided_slice %34 {offsets = [0, 2], sizes = [8, 2], strides = [1, 1]} : vector<8x4xf32> to vector<8x2xf32>
    %cst_13 = arith.constant 5.000000e-01 : f32
    %37 = vector.broadcast %cst_13 : f32 to vector<8x2xf32>
    %38 = arith.mulf %37, %36 : vector<8x2xf32>
    %39 = arith.subf %35, %38 : vector<8x2xf32>
    %40 = arith.mulf %39, %33 : vector<8x2xf32>
    %41 = arith.addf %35, %38 : vector<8x2xf32>
    %42 = arith.mulf %41, %33 : vector<8x2xf32>
    %43 = vector.extract_strided_slice %2 {offsets = [0, 4], sizes = [8, 4], strides = [1, 1]} : vector<8x10xf32> to vector<8x4xf32>
    %44 = vector.extract_strided_slice %43 {offsets = [0, 0], sizes = [8, 2], strides = [1, 1]} : vector<8x4xf32> to vector<8x2xf32>
    %45 = vector.extract_strided_slice %43 {offsets = [0, 2], sizes = [8, 2], strides = [1, 1]} : vector<8x4xf32> to vector<8x2xf32>
    %cst_14 = arith.constant 5.000000e-01 : f32
    %46 = vector.broadcast %cst_14 : f32 to vector<8x2xf32>
    %47 = arith.mulf %46, %45 : vector<8x2xf32>
    %48 = arith.subf %44, %47 : vector<8x2xf32>
    %49 = arith.mulf %48, %33 : vector<8x2xf32>
    %50 = arith.addf %44, %47 : vector<8x2xf32>
    %51 = arith.mulf %50, %33 : vector<8x2xf32>
    %52 = arith.sitofp %17 : vector<8x1xi32> to vector<8x1xf32>
    %53 = tpu.concatenate %10, %52, %40, %42, %49, %51 in 1 : vector<8x1xf32>, vector<8x1xf32>, vector<8x2xf32>, vector<8x2xf32>, vector<8x2xf32>, vector<8x2xf32> -> vector<8x10xf32>
    %cst_15 = arith.constant 0.000000e+00 : f32
    %54 = vector.broadcast %cst_15 : f32 to vector<8x6xf32>
    %55 = tpu.concatenate %53, %54 in 1 : vector<8x10xf32>, vector<8x6xf32> -> vector<8x16xf32>
    %c0_16 = arith.constant 0 : index
    %c112 = arith.constant 112 : index
    %56 = vector.load %arg5[%c0_16, %c112] : memref<8x128xf32, #tpu.memory_space<vmem>>, vector<8x16xf32>
    tpu.vector_store %arg5[%c0_16, %c112], %55 {strides = array<i32>} : memref<8x128xf32, #tpu.memory_space<vmem>>, vector<8x16xf32>,
    return
  }
  func.func @transform_0(%arg0: i32) -> (i32, i32) {
    %c0_i32 = arith.constant 0 : i32
    %c0_i32_0 = arith.constant 0 : i32
    return %arg0, %c0_i32 : i32, i32
  }
  func.func @transform_1(%arg0: i32) -> (i32, i32) {
    %c0_i32 = arith.constant 0 : i32
    %c0_i32_0 = arith.constant 0 : i32
    return %arg0, %c0_i32 : i32, i32
  }
  func.func @transform_2(%arg0: i32) -> (i32, i32) {
    %c0_i32 = arith.constant 0 : i32
    %c0_i32_0 = arith.constant 0 : i32
    return %arg0, %c0_i32 : i32, i32
  }
  func.func @transform_3(%arg0: i32) -> (i32, i32) {
    %c0_i32 = arith.constant 0 : i32
    %c0_i32_0 = arith.constant 0 : i32
    %c0_i32_1 = arith.constant 0 : i32
    return %c0_i32, %c0_i32_0 : i32, i32
  }
  func.func @transform_4(%arg0: i32) -> (i32, i32) {
    %c0_i32 = arith.constant 0 : i32
    %c0_i32_0 = arith.constant 0 : i32
    return %arg0, %c0_i32 : i32, i32
  }
}

</mosaic_0001>

<llo_original>
// kernel: tpu_custom_call.1
$region0: #{tpu_custom_call.1}
  #allocation0 [shape = 'u32[]', space=smem, size = 0x4, offset = 0x4, fixed_abs, tag = 'smem constant byte address 0x4 - core index']
  #allocation1 [shape = 'u32[144,128]{1,0:T(1,128)}', space=vmem, size = 0x12000, scoped, tag = 'internal scratch']
  %s0 = inlined_call_operand.hbm [shape: f32[16,16], index: 0, kind: input, shape index: {}]
  %s1 = inlined_call_operand.hbm [shape: f32[16,128], index: 1, kind: input, shape index: {}]
  %s2 = inlined_call_operand.hbm [shape: f32[16,10], index: 2, kind: input, shape index: {}]
  %s3 = inlined_call_operand.hbm [shape: bf16[16,128], index: 3, kind: input, shape index: {}]
  %s4 = inlined_call_operand.hbm [shape: f32[16,128], index: 4, kind: output, shape index: {}]
  %s5 = sld [smem:[#allocation0]]
  $region65: #{tpu_custom_call.1} parent=0
    _
  %s7 = ssub.s32 1, %s5
  %s8 = scalar_select 0, %s7, %s5
  $region1: #{tpu_custom_call.1} parent=0
    #allocation2 [shape = 'u8[8192]{0}', space=vmem, size = 0x2000, scoped, tag = 'input window, operand 0']
    #allocation3 [shape = 's32[2]{0}', space=sflag, size = 0x8, scoped, tag = 'scoped memory for tpu_custom_call.1']
    #allocation4 [shape = 's32[2]{0}', space=sflag, size = 0x8, scoped, tag = 'scoped memory for tpu_custom_call.1']
    #allocation5 [shape = 'u8[8192]{0}', space=vmem, size = 0x2000, scoped, tag = 'input window, operand 1']
    #allocation6 [shape = 's32[2]{0}', space=sflag, size = 0x8, scoped, tag = 'scoped memory for tpu_custom_call.1']
    #allocation7 [shape = 'u8[8192]{0}', space=vmem, size = 0x2000, scoped, tag = 'input window, operand 2']
    #allocation8 [shape = 'u8[4096]{0}', space=vmem, size = 0x1000, scoped, tag = 'input window, operand 3, single buffered']
    #allocation9 [shape = 's32[1]{0}', space=sflag, size = 0x4, scoped, tag = 'scoped memory for tpu_custom_call.1']
    #allocation10 [shape = 'u8[8192]{0}', space=vmem, size = 0x2000, scoped, tag = 'output window, operand 0']
    %9 = vsyncpa [#allocation3], 0
    %s10 = scalar_lea.sflag [#allocation3], 1
    %11 = vsyncpa %s10, 0
    %12 = vsyncpa [#allocation6], 0
    %s13 = scalar_lea.sflag [#allocation6], 1
    %14 = vsyncpa %s13, 0
    %15 = vsyncpa [#allocation9], 0
    %16 = vsyncpa [#allocation4], 0
    %s17 = scalar_lea.sflag [#allocation4], 1
    %18 = vsyncpa %s17, 0
    loop: start=0, step=1, limit=4
    $region2: #{tpu_custom_call.1} parent=1 // loop_pre_header
      _
    $region3: #{tpu_custom_call.1} parent=1 // loop_header
      %s20 = sphi 0, %s24
      %p21 = scmp.ge.s32.totalorder %s20, 4
      %s30 = sphi 0, %s32
      %s33 = sphi 0, %s30
      %s34 = sphi 0, %s33
      %s50 = sphi 0, %s34
      %s56 = sphi 0, %s58
      %s59 = sphi 0, %s56
      %s60 = sphi 0, %s59
      %s76 = sphi 0, %s60
      %s82 = sphi 0, %s84
      %s85 = sphi 0, %s82
      %s86 = sphi 0, %s85
      %s102 = sphi 0, %s86
      %s106 = sphi 0, %s106
      %s108 = sphi 0, %s106
      %s109 = sphi 0, %s108
      %s123 = sphi 0, %s109
      %s129 = sphi 0, %s131
      %s132 = sphi 0, %s129
      %s133 = sphi 0, %s132
      %s149 = sphi 0, %s133
    $region4: #{tpu_custom_call.1} parent=1 // loop_header_branch
      %23 = sbr.rel (%p21) target = $region8
    $region5: #{tpu_custom_call.1} parent=1 // loop_body
      %s25 = ssub.s32 %s20, 1
      %s26 = ssub.s32 %s20, 2
      %s27 = sadd.s32 %s20, 1
      %s28 = ssub.s32 %s20, %s27
      %p29 = scmp.eq.s32.totalorder %s28, 0
      %s31 = sadd.s32 %s30, 1
      %s32 = scalar_select %p29, %s30, %s31
      %p35 = pneg %p29
      %p36 = scmp.eq.s32.totalorder %s20, 1
      %p37 = por %p35, %p36
      %p38 = scmp.ne.s32.totalorder %s30, %s33
      %p39 = scmp.eq.s32.totalorder %s20, 0
      %p40 = por %p38, %p39
      %p41 = scmp.ne.s32.totalorder %s30, %s33
      %p42 = scmp.eq.s32.totalorder %s25, 1
      %p43 = por %p41, %p42
      %p44 = scmp.ne.s32.totalorder %s33, %s34
      %p45 = scmp.eq.s32.totalorder %s25, 0
      %p46 = por %p44, %p45
      %p47 = scmp.ne.s32.totalorder %s33, %s34
      %p48 = scmp.eq.s32.totalorder %s26, 1
      %p49 = por %p47, %p48
      %p51 = scmp.ne.s32.totalorder %s34, %s50
      %p52 = scmp.eq.s32.totalorder %s26, 0
      %p53 = por %p51, %p52
      %s54 = ssub.s32 %s20, %s27
      %p55 = scmp.eq.s32.totalorder %s54, 0
      %s57 = sadd.s32 %s56, 1
      %s58 = scalar_select %p55, %s56, %s57
      %p61 = pneg %p55
      %p62 = scmp.eq.s32.totalorder %s20, 1
      %p63 = por %p61, %p62
      %p64 = scmp.ne.s32.totalorder %s56, %s59
      %p65 = scmp.eq.s32.totalorder %s20, 0
      %p66 = por %p64, %p65
      %p67 = scmp.ne.s32.totalorder %s56, %s59
      %p68 = scmp.eq.s32.totalorder %s25, 1
      %p69 = por %p67, %p68
      %p70 = scmp.ne.s32.totalorder %s59, %s60
      %p71 = scmp.eq.s32.totalorder %s25, 0
      %p72 = por %p70, %p71
      %p73 = scmp.ne.s32.totalorder %s59, %s60
      %p74 = scmp.eq.s32.totalorder %s26, 1
      %p75 = por %p73, %p74
      %p77 = scmp.ne.s32.totalorder %s60, %s76
      %p78 = scmp.eq.s32.totalorder %s26, 0
      %p79 = por %p77, %p78
      %s80 = ssub.s32 %s20, %s27
      %p81 = scmp.eq.s32.totalorder %s80, 0
      %s83 = sadd.s32 %s82, 1
      %s84 = scalar_select %p81, %s82, %s83
      %p87 = pneg %p81
      %p88 = scmp.eq.s32.totalorder %s20, 1
      %p89 = por %p87, %p88
      %p90 = scmp.ne.s32.totalorder %s82, %s85
      %p91 = scmp.eq.s32.totalorder %s20, 0
      %p92 = por %p90, %p91
      %p93 = scmp.ne.s32.totalorder %s82, %s85
      %p94 = scmp.eq.s32.totalorder %s25, 1
      %p95 = por %p93, %p94
      %p96 = scmp.ne.s32.totalorder %s85, %s86
      %p97 = scmp.eq.s32.totalorder %s25, 0
      %p98 = por %p96, %p97
      %p99 = scmp.ne.s32.totalorder %s85, %s86
      %p100 = scmp.eq.s32.totalorder %s26, 1
      %p101 = por %p99, %p100
      %p103 = scmp.ne.s32.totalorder %s86, %s102
      %p104 = scmp.eq.s32.totalorder %s26, 0
      %p105 = por %p103, %p104
      %s107 = sadd.s32 %s106, 1
      %p110 = scmp.eq.s32.totalorder %s20, 1
      %p111 = scmp.ne.s32.totalorder %s106, %s108
      %p112 = scmp.eq.s32.totalorder %s20, 0
      %p113 = por %p111, %p112
      %p114 = scmp.ne.s32.totalorder %s106, %s108
      %p115 = scmp.eq.s32.totalorder %s25, 1
      %p116 = por %p114, %p115
      %p117 = scmp.ne.s32.totalorder %s108, %s109
      %p118 = scmp.eq.s32.totalorder %s25, 0
      %p119 = por %p117, %p118
      %p120 = scmp.ne.s32.totalorder %s108, %s109
      %p121 = scmp.eq.s32.totalorder %s26, 1
      %p122 = por %p120, %p121
      %p124 = scmp.ne.s32.totalorder %s109, %s123
      %p125 = scmp.eq.s32.totalorder %s26, 0
      %p126 = por %p124, %p125
      %s127 = ssub.s32 %s20, %s27
      %p128 = scmp.eq.s32.totalorder %s127, 0
      %s130 = sadd.s32 %s129, 1
      %s131 = scalar_select %p128, %s129, %s130
      %p134 = pneg %p128
      %p135 = scmp.eq.s32.totalorder %s20, 1
      %p136 = por %p134, %p135
      %p137 = scmp.ne.s32.totalorder %s129, %s132
      %p138 = scmp.eq.s32.totalorder %s20, 0
      %p139 = por %p137, %p138
      %p140 = scmp.ne.s32.totalorder %s129, %s132
      %p141 = scmp.eq.s32.totalorder %s25, 1
      %p142 = por %p140, %p141
      %p143 = scmp.ne.s32.totalorder %s132, %s133
      %p144 = scmp.eq.s32.totalorder %s25, 0
      %p145 = por %p143, %p144
      %p146 = scmp.ne.s32.totalorder %s132, %s133
      %p147 = scmp.eq.s32.totalorder %s26, 1
      %p148 = por %p146, %p147
      %p150 = scmp.ne.s32.totalorder %s133, %s149
      %p151 = scmp.eq.s32.totalorder %s26, 0
      %p152 = por %p150, %p151
      %p153 = scmp.le.s32.totalorder 1, %s20
      %p154 = scmp.lt.s32.totalorder %s20, 3
      %p155 = pnand %p153, %p154
      %p156 = pneg %p155
      // Predicated region
      $region9: #{tpu_custom_call.1} parent=5 // pred_check
        _
      $region10: #{tpu_custom_call.1} parent=5 // pred_check_branch
        %158 = sbr.rel (%p155) target = $region12
      $region11: #{tpu_custom_call.1} parent=5 // pred_region
        %s159 = ssub.s32 %s20, 1
        // Predicated region
        $region13: #{tpu_custom_call.1} parent=11 // pred_check
          %p160 = pneg %p119
        $region14: #{tpu_custom_call.1} parent=11 // pred_check_branch
          %162 = sbr.rel (%p160) target = $region16
        $region15: #{tpu_custom_call.1} parent=11 // pred_region
          %s164 = ssub.s32 128, 128
          %165 = vsyncadd [#allocation9], %s164
          %s166 = sshll.u32 [#allocation8], 4
          %s167 = int_to_ptr.vmem [resolvable:$true] %s166
          %172 = dma.hbm_to_vmem [thread:$0]  %s3, 128, %s167, [#allocation9], 64, 64, 4
        $region16: #{tpu_custom_call.1} parent=11 // pred_fallthru
          _
      $region12: #{tpu_custom_call.1} parent=5 // pred_fallthru
        _
      %p173 = scmp.lt.s32.totalorder %s20, 2
      // Predicated region
      $region17: #{tpu_custom_call.1} parent=5 // pred_check
        %p174 = pneg %p173
      $region18: #{tpu_custom_call.1} parent=5 // pred_check_branch
        %176 = sbr.rel (%p174) target = $region20
      $region19: #{tpu_custom_call.1} parent=5 // pred_region
        // Predicated region
        $region21: #{tpu_custom_call.1} parent=19 // pred_check
          %p177 = pneg %p40
        $region22: #{tpu_custom_call.1} parent=19 // pred_check_branch
          %179 = sbr.rel (%p177) target = $region24
        $region23: #{tpu_custom_call.1} parent=19 // pred_region
          %s180 = sand.u32 %s30, 1
          %s181 = scalar_lea.sflag [#allocation3], %s180
          %s182 = sand.u32 %s30, 1
          %s183 = smul.addr %s182, 8
          %s184 = scalar_lea.vmem [#allocation2], %s183
          %s186 = ssub.s32 128, 128
          %187 = vsyncadd %s181, %s186
          %s188 = smul.addr %s20, 128
          %s189 = scalar_lea.hbm %s0, %s188
          %s191 = sshll.u32 %s184, 4
          %s192 = int_to_ptr.vmem [resolvable:$true] %s191
          %194 = dma.hbm_to_vmem [thread:$0]  %s189, 128, %s192, %s181
        $region24: #{tpu_custom_call.1} parent=19 // pred_fallthru
          _
        // Predicated region
        $region25: #{tpu_custom_call.1} parent=19 // pred_check
          %p195 = pneg %p66
        $region26: #{tpu_custom_call.1} parent=19 // pred_check_branch
          %197 = sbr.rel (%p195) target = $region28
        $region27: #{tpu_custom_call.1} parent=19 // pred_region
          %s198 = sand.u32 %s20, 1
          %s199 = scalar_lea.sflag [#allocation6], %s198
          %s200 = sand.u32 %s56, 1
          %s201 = smul.addr %s200, 8
          %s202 = scalar_lea.vmem [#allocation5], %s201
          %s204 = ssub.s32 128, 128
          %205 = vsyncadd %s199, %s204
          %s206 = smul.addr %s20, 128
          %s207 = scalar_lea.hbm %s1, %s206
          %s209 = sshll.u32 %s202, 4
          %s210 = int_to_ptr.vmem [resolvable:$true] %s209
          %212 = dma.hbm_to_vmem [thread:$0]  %s207, 128, %s210, %s199
        $region28: #{tpu_custom_call.1} parent=19 // pred_fallthru
          _
        // Predicated region
        $region29: #{tpu_custom_call.1} parent=19 // pred_check
          %p213 = pneg %p92
        $region30: #{tpu_custom_call.1} parent=19 // pred_check_branch
          %215 = sbr.rel (%p213) target = $region32
        $region31: #{tpu_custom_call.1} parent=19 // pred_region
          %s216 = sand.u32 %s20, 1
          %s217 = scalar_lea.sflag [#allocation6], %s216
          %s218 = sand.u32 %s82, 1
          %s219 = smul.addr %s218, 8
          %s220 = scalar_lea.vmem [#allocation7], %s219
          %s222 = ssub.s32 128, 128
          %223 = vsyncadd %s217, %s222
          %s224 = smul.addr %s20, 128
          %s225 = scalar_lea.hbm %s2, %s224
          %s227 = sshll.u32 %s220, 4
          %s228 = int_to_ptr.vmem [resolvable:$true] %s227
          %230 = dma.hbm_to_vmem [thread:$0]  %s225, 128, %s228, %s217
        $region32: #{tpu_custom_call.1} parent=19 // pred_fallthru
          _
      $region20: #{tpu_custom_call.1} parent=5 // pred_fallthru
        _
      %p231 = scmp.le.s32.totalorder 1, %s20
      %p232 = scmp.lt.s32.totalorder %s20, 3
      %p233 = pnand %p231, %p232
      %p234 = pneg %p233
      // Predicated region
      $region33: #{tpu_custom_call.1} parent=5 // pred_check
        _
      $region34: #{tpu_custom_call.1} parent=5 // pred_check_branch
        %236 = sbr.rel (%p233) target = $region36
      $region35: #{tpu_custom_call.1} parent=5 // pred_region
        %s237 = ssub.s32 %s20, 1
        %s238 = sand.u32 %s33, 1
        %s239 = scalar_lea.sflag [#allocation3], %s238
        %s240 = sand.u32 %s33, 1
        %s241 = smul.addr %s240, 8
        %s242 = scalar_lea.vmem [#allocation2], %s241
        // Predicated region
        $region37: #{tpu_custom_call.1} parent=35 // pred_check
          %p243 = pneg %p46
        $region38: #{tpu_custom_call.1} parent=35 // pred_check_branch
          %245 = sbr.rel (%p243) target = $region40
        $region39: #{tpu_custom_call.1} parent=35 // pred_region
          %246 = dma.done %s239, 128
        $region40: #{tpu_custom_call.1} parent=35 // pred_fallthru
          _
        %s247 = sand.u32 %s25, 1
        %s248 = scalar_lea.sflag [#allocation6], %s247
        %s249 = sand.u32 %s59, 1
        %s250 = smul.addr %s249, 8
        %s251 = scalar_lea.vmem [#allocation5], %s250
        // Predicated region
        $region41: #{tpu_custom_call.1} parent=35 // pred_check
          %p252 = pneg %p72
        $region42: #{tpu_custom_call.1} parent=35 // pred_check_branch
          %254 = sbr.rel (%p252) target = $region44
        $region43: #{tpu_custom_call.1} parent=35 // pred_region
          %255 = dma.done %s248, 128
        $region44: #{tpu_custom_call.1} parent=35 // pred_fallthru
          _
        %s256 = sand.u32 %s25, 1
        %s257 = scalar_lea.sflag [#allocation6], %s256
        %s258 = sand.u32 %s85, 1
        %s259 = smul.addr %s258, 8
        %s260 = scalar_lea.vmem [#allocation7], %s259
        // Predicated region
        $region45: #{tpu_custom_call.1} parent=35 // pred_check
          %p261 = pneg %p98
        $region46: #{tpu_custom_call.1} parent=35 // pred_check_branch
          %263 = sbr.rel (%p261) target = $region48
        $region47: #{tpu_custom_call.1} parent=35 // pred_region
          %264 = dma.done %s257, 128
        $region48: #{tpu_custom_call.1} parent=35 // pred_fallthru
          _
        // Predicated region
        $region49: #{tpu_custom_call.1} parent=35 // pred_check
          %p265 = pneg %p119
        $region50: #{tpu_custom_call.1} parent=35 // pred_check_branch
          %267 = sbr.rel (%p265) target = $region52
        $region51: #{tpu_custom_call.1} parent=35 // pred_region
          %268 = dma.done [#allocation9], 128
        $region52: #{tpu_custom_call.1} parent=35 // pred_fallthru
          _
        %s269 = sand.u32 %s33, 1
        %s270 = scalar_lea.sflag [#allocation3], %s269
        %s271 = sand.u32 %s33, 1
        %s272 = smul.addr %s271, 8
        %s273 = scalar_lea.vmem [#allocation2], %s272
        %p274 = pneg %p46
        %p275 = pneg %p43
        %s276 = sand.u32 %s25, 1
        %s277 = scalar_lea.sflag [#allocation6], %s276
        %s278 = sand.u32 %s59, 1
        %s279 = smul.addr %s278, 8
        %s280 = scalar_lea.vmem [#allocation5], %s279
        %p281 = pneg %p72
        %p282 = pneg %p69
        %s283 = sand.u32 %s25, 1
        %s284 = scalar_lea.sflag [#allocation6], %s283
        %s285 = sand.u32 %s85, 1
        %s286 = smul.addr %s285, 8
        %s287 = scalar_lea.vmem [#allocation7], %s286
        %p288 = pneg %p98
        %p289 = pneg %p95
        %p290 = pneg %p119
        %p291 = pneg %p116
        %p292 = pneg %p145
        %p293 = pneg %p142
        %s294 = sand.u32 %s132, 1
        %s295 = scalar_lea.sflag [#allocation4], %s294
        %s296 = sand.u32 %s132, 1
        %s297 = smul.addr %s296, 8
        %s298 = scalar_lea.vmem [#allocation10], %s297
        %v300 = vld [vmem:[%s242] sm:$0xff]
        %v301 = vld [vmem:[%s251] sm:$0xff]
        %v302 = vld [vmem:[%s260] sm:$0xff]
        %v303 = vld [vmem:[#allocation8] sm:$0xf]
        %v304 = vld [vmem:[#allocation8 + $0x4] sm:$0xf]
        %vm305 = vcmask 130048
        %v306 = vsel %vm305, %v300, -inf
        %307 = vmax.xlane.f32.xlu0 %v306
        %v308 = vpop.xlane.xlu0 %307
        %v309 = vxor.u32 %v308, 2147483648
        %v310 = vmul.f32 %v309, 1.442695
        %v311 = vpow.pop %v310
        %v312 = vadd.f32 %v311, 1.0
        %v313 = vrcp.pop %v312
        %v314 = vmul.f32 1.0, %v313
        %v315 = vlaneseq
        %v316 = vand.u32 %v315, 127
        %vm317 = vcmp.eq.f32.partialorder %v300, %v308
        %v318 = vsel %vm317, %v316, 16
        %v319 = vsel %vm305, %v318, 2147483647
        %v320 = vand.u32 %v319, 65535
        %v321 = vshra.s32 %v319, 16
        %v322 = vcvt.s32.f32 %v320
        %v323 = vcvt.s32.f32 %v321
        %324 = vmin.xlane.f32.xlu0 %v323
        %v325 = vpop.xlane.xlu0 %324
        %vm326 = vcmp.eq.f32.partialorder %v323, %v325
        %v327 = vsel %vm326, %v322, inf
        %328 = vmin.xlane.f32.xlu0 %v327
        %v329 = vpop.xlane.xlu0 %328
        %v330 = vcvt.f32.s32 %v329
        %v331 = vcvt.f32.s32 %v325
        %v332 = vshll.u32 %v331, 16
        %v333 = vadd.s32 %v332, %v330
        %vm334 = vcmp.eq.s32.totalorder %v316, %v333
        %v335 = vsel %vm334, 1, 0
        %v336 = vcvt.s32.f32 %v335
        %v337 = vpack.c.bf16 %v336, %v336
        %v340 = vunpack.c.l.b16 %v303
        %v341 = vunpack.c.l.b16 %v304
        %v342 = vpack.c.b16 %v341, %v340
        %v345 = vsel %vm305, %v337, 0
        %347 = vmatprep.subr.bf16.mxu0 0
        %348 = vmatpush1.bf16.msra.mxu0 0
        %349 = vmatprep.subr.bf16.mxu0 0
        %350 = vmatpush1.bf16.msra.mxu0 0
        %351 = vmatprep.subr.bf16.mxu0 0
        %352 = vmatpush1.bf16.msra.mxu0 0
        %353 = vmatprep.subr.bf16.mxu0 0
        %354 = vmatpush1.bf16.msra.mxu0 0
        %355 = vmatprep.subr.bf16.mxu0 0
        %356 = vmatpush1.bf16.msra.mxu0 0
        %357 = vmatprep.subr.bf16.mxu0 0
        %358 = vmatpush1.bf16.msra.mxu0 0
        %359 = vmatprep.subr.bf16.mxu0 0
        %360 = vmatpush1.bf16.msra.mxu0 0
        %361 = vmatprep.subr.bf16.mxu0 0
        %362 = vmatpush1.bf16.msra.mxu0 %v342
        %363 = vmatprep.subr.bf16.mxu0 0
        %364 = vmatpush2.bf16.msra.mxu0 0
        %365 = vmatprep.subr.bf16.mxu0 0
        %366 = vmatpush2.bf16.msra.mxu0 0
        %367 = vmatprep.subr.bf16.mxu0 0
        %368 = vmatpush2.bf16.msra.mxu0 0
        %369 = vmatprep.subr.bf16.mxu0 0
        %370 = vmatpush2.bf16.msra.mxu0 0
        %371 = vmatprep.subr.bf16.mxu0 0
        %372 = vmatpush2.bf16.msra.mxu0 0
        %373 = vmatprep.subr.bf16.mxu0 0
        %374 = vmatpush2.bf16.msra.mxu0 0
        %375 = vmatprep.subr.bf16.mxu0 0
        %376 = vmatpush2.bf16.msra.mxu0 0
        %377 = vmatprep.subr.bf16.mxu0 0
        %378 = vmatpush2.bf16.msra.mxu0 0
        %379 = vmatprep.mubr.bf16.mxu0 0
        %380 = vmatmul.mubr.bf16.gmra.mxu0 %v345
        %v381 = vpop.f32.mrf.mxu0
        %v382 = vadd.f32 0.0, %v381
        %v383 = vpop.f32.mrf.mxu0
        %v384 = vpop.f32.mrf.mxu0
        %v385 = vpop.f32.mrf.mxu0
        %386 = vdwg.mxu0
        %v387 = vxor.u32 %v301, 2147483648
        %v388 = vmul.f32 %v387, 1.442695
        %v389 = vpow.pop %v388
        %v390 = vadd.f32 %v389, 1.0
        %v391 = vrcp.pop %v390
        %v392 = vmul.f32 1.0, %v391
        %v393 = vmul.f32 %v392, %v314
        %v394 = vmul.f32 %v393, %v382
        %395 = vst [vmem:[%s298] sm:$0xff] %v394
        %v396 = vmul.f32 %v302, 0.5
        %398 = vrot.lane.b32.xlu0 %v396, 126
        %v399 = vpop.permute.xlu0 %398
        %v401 = vsub.f32 %v302, %v399
        %403 = vrot.lane.b32.xlu0 %v302, 120
        %v404 = vpop.permute.xlu0 %403
        %v406 = vmul.f32 %v401, %v404
        %v407 = vadd.f32 %v302, %v399
        %v408 = vmul.f32 %v407, %v404
        %409 = vrot.lane.b32.xlu0 %v302, 124
        %v410 = vpop.permute.xlu0 %409
        %v412 = vmul.f32 %v401, %v410
        %v413 = vmul.f32 %v407, %v410
        %v414 = vcvt.s32.f32 %v333
        %416 = vrot.lane.b32.xlu0 %v406, 2
        %v417 = vpop.permute.xlu0 %416
        %420 = vrot.lane.b32.xlu0 %v408, 4
        %v421 = vpop.permute.xlu0 %420
        %424 = vrot.lane.b32.xlu0 %v412, 2
        %v425 = vpop.permute.xlu0 %424
        %428 = vrot.lane.b32.xlu0 %v413, 4
        %v429 = vpop.permute.xlu0 %428
        %vm431 = vcmask 7168
        %v432 = vsel %vm431, %v314, %v414
        %vm433 = vcmask 15360
        %v434 = vsel %vm433, %v432, %v417
        %vm435 = vcmask 31744
        %v436 = vsel %vm435, %v434, %v421
        %vm437 = vcmask 48128
        %v438 = vsel %vm437, %v436, %v425
        %vm439 = vcmask 64512
        %v440 = vsel %vm439, %v438, %v429
        %vm441 = vcmask 80896
        %v442 = vsel %vm441, %v440, 0.0
        %444 = vrot.lane.b32.xlu0 %v442, 112
        %v445 = vpop.permute.xlu0 %444
        %vm447 = vcmask 1048448
        %448 = vst.msk [vmem:[%s298] sm:$0xff] %vm447, %v445
        %s449 = sand.u32 %s132, 1
        %s450 = scalar_lea.sflag [#allocation4], %s449
        %s451 = sand.u32 %s132, 1
        %s452 = smul.addr %s451, 8
        %s453 = scalar_lea.vmem [#allocation10], %s452
        // Predicated region
        $region53: #{tpu_custom_call.1} parent=35 // pred_check
          %p454 = pneg %p142
        $region54: #{tpu_custom_call.1} parent=35 // pred_check_branch
          %456 = sbr.rel (%p454) target = $region56
        $region55: #{tpu_custom_call.1} parent=35 // pred_region
          %s458 = ssub.s32 128, 128
          %459 = vsyncadd %s450, %s458
          %s460 = smul.addr %s25, 128
          %s461 = scalar_lea.hbm %s4, %s460
          %s463 = sshll.u32 %s453, 4
          %s464 = int_to_ptr.vmem [resolvable:$true] %s463
          %466 = dma.vmem_to_hbm [thread:$0]  %s464, 128, %s461, %s450
        $region56: #{tpu_custom_call.1} parent=35 // pred_fallthru
          _
      $region36: #{tpu_custom_call.1} parent=5 // pred_fallthru
        _
      %p467 = scmp.le.s32.totalorder 2, %s20
      // Predicated region
      $region57: #{tpu_custom_call.1} parent=5 // pred_check
        %p468 = pneg %p467
      $region58: #{tpu_custom_call.1} parent=5 // pred_check_branch
        %470 = sbr.rel (%p468) target = $region60
      $region59: #{tpu_custom_call.1} parent=5 // pred_region
        %s471 = ssub.s32 %s20, 2
        // Predicated region
        $region61: #{tpu_custom_call.1} parent=59 // pred_check
          %p472 = pneg %p148
        $region62: #{tpu_custom_call.1} parent=59 // pred_check_branch
          %474 = sbr.rel (%p472) target = $region64
        $region63: #{tpu_custom_call.1} parent=59 // pred_region
          %s475 = sand.u32 %s133, 1
          %s476 = scalar_lea.sflag [#allocation4], %s475
          %s477 = sand.u32 %s133, 1
          %s478 = smul.addr %s477, 8
          %s479 = scalar_lea.vmem [#allocation10], %s478
          %480 = dma.done %s476, 128
        $region64: #{tpu_custom_call.1} parent=59 // pred_fallthru
          _
      $region60: #{tpu_custom_call.1} parent=5 // pred_fallthru
        _
    $region6: #{tpu_custom_call.1} parent=1 // loop_footer
      %s24 = sadd.s32 1, %s20
    $region7: #{tpu_custom_call.1} parent=1 // loop_footer_branch
      %19 = sbr.rel target = $region3
    $region8: #{tpu_custom_call.1} parent=1 // loop_exit
      _
    %481 = vsyncpa [#allocation3], 1
    %s482 = scalar_lea.sflag [#allocation3], 1
    %483 = vsyncpa %s482, 1
    %484 = vsyncpa [#allocation6], 1
    %s485 = scalar_lea.sflag [#allocation6], 1
    %486 = vsyncpa %s485, 1
    %487 = vsyncpa [#allocation9], 1
    %488 = vsyncpa [#allocation4], 1
    %s489 = scalar_lea.sflag [#allocation4], 1
    %490 = vsyncpa %s489, 1

</llo_original>
